<compile_context>
chip_gen: v7x
topology: tpu7x:2x2x1
jax: 0.10.0
libtpu: 0.0.40
codegen_flags: <defaults>
</compile_context>

<pallas_src>
import jax
import jax.numpy as jnp
from jax import lax
from jax.experimental import pallas as pl
from jax.experimental.pallas import tpu as pltpu


def _renorm_rows(v):
    # nn.Embedding(max_norm=1): rows with L2 norm > 1 are rescaled to unit norm.
    # squared-norm + rsqrt avoids the sqrt -> divide dependency chain.
    nrm2 = jnp.sum(v * v, axis=-1, keepdims=True)
    scale = jnp.where(nrm2 > 1.0, lax.rsqrt(nrm2 + 1e-12), 1.0)
    return v * scale


def gcn4rec_fused_kernel(seed_ref, u_idx_ref, i_idx_ref,
                         users_ref, x_ref, a_ref,
                         w1_ref, b1_ref, w2_ref, b2_ref,
                         out_ref):
    n_users = users_ref.shape[0]
    n_nodes = x_ref.shape[0]
    hidden = w1_ref.shape[1]
    batch = u_idx_ref.shape[0]

    # ---- item embedding table + max_norm renorm ------------------------------
    x = _renorm_rows(x_ref[...])                                    # (N, dim) f32

    a_bf = a_ref[...].astype(jnp.bfloat16)                          # (N, N) bf16

    # ---- GCNConv 1:  relu(A_hat @ (X @ W1) + b1)  (bf16 MXU, f32 accum) ------
    xw = jnp.dot(x.astype(jnp.bfloat16), w1_ref[...].astype(jnp.bfloat16),
                 preferred_element_type=jnp.float32)                # (N, hidden)
    h = jnp.dot(a_bf, xw.astype(jnp.bfloat16),
                preferred_element_type=jnp.float32) + b1_ref[...]
    h = jnp.maximum(h, 0.0)

    # ---- F.dropout(p=0.5, training) ------------------------------------------
    # Portable in-kernel hash PRNG (works on TPU and in interpret mode).
    s = seed_ref[0]
    rows = lax.broadcasted_iota(jnp.int32, h.shape, 0)
    cols = lax.broadcasted_iota(jnp.int32, h.shape, 1)
    z = (rows * jnp.int32(hidden) + cols) * jnp.int32(1103515245)
    z = z + s * jnp.int32(747796405) + jnp.int32(1013904223)
    z = z ^ (z >> 13)
    z = z * jnp.int32(1664525) + jnp.int32(1013904223)
    z = z ^ (z >> 17)
    keep = z < 0                                                    # ~Bernoulli(0.5)
    h = jnp.where(keep, h * 2.0, 0.0)                               # scale kept by 1/(1-p)

    # ---- GCNConv 2, batch rows only:  A_hat[i, :] @ (H @ W2) + b2 ------------
    hw2 = jnp.dot(h.astype(jnp.bfloat16), w2_ref[...].astype(jnp.bfloat16),
                  preferred_element_type=jnp.float32)               # (N, dim)

    i_idx = i_idx_ref[...]                                          # (B, 1) int32
    sel_i = jnp.where(
        lax.broadcasted_iota(jnp.int32, (batch, n_nodes), 1) == i_idx, 1.0, 0.0)
    a_rows = jnp.dot(sel_i.astype(jnp.bfloat16), a_bf,
                     preferred_element_type=jnp.float32)            # (B, N) row gather
    items = jnp.dot(a_rows.astype(jnp.bfloat16), hw2.astype(jnp.bfloat16),
                    preferred_element_type=jnp.float32) + b2_ref[...]   # (B, dim)

    # ---- user embedding gather (one-hot matmul) + max_norm renorm ------------
    u_idx = u_idx_ref[...]                                          # (B, 1) int32
    sel_u = jnp.where(
        lax.broadcasted_iota(jnp.int32, (batch, n_users), 1) == u_idx, 1.0, 0.0)
    users = jnp.dot(sel_u, users_ref[...],
                    preferred_element_type=jnp.float32)             # (B, dim) exact gather
    users = _renorm_rows(users)

    # ---- logits: sigmoid(sum(users * items, dim=1)) --------------------------
    # diag(users @ items^T) extracted with a sublane reduction so the result is
    # produced (and stored) as a lane-dense (1, B) row.
    ui = jnp.dot(users, items.T, preferred_element_type=jnp.float32)    # (B, B)
    eye = (lax.broadcasted_iota(jnp.int32, (batch, batch), 0)
           == lax.broadcasted_iota(jnp.int32, (batch, batch), 1))
    uv = jnp.sum(jnp.where(eye, ui, 0.0), axis=0, keepdims=True)        # (1, B)

    # numerically stable sigmoid (exp argument always <= 0)
    e = jnp.exp(-jnp.abs(uv))
    p = 1.0 / (1.0 + e)
    out_ref[...] = jnp.where(uv >= 0.0, p, 1.0 - p)


def gcn4rec_forward(params, a_hat, u, i, seed):
    """Fused GCN4Rec forward: returns sigmoid logits of shape (batch,)."""
    batch = u.shape[0]
    vmem = pl.BlockSpec(memory_space=pltpu.MemorySpace.VMEM)
    smem = pl.BlockSpec(memory_space=pltpu.MemorySpace.SMEM)
    out = pl.pallas_call(
        gcn4rec_fused_kernel,
        out_shape=jax.ShapeDtypeStruct((1, batch), jnp.float32),
        in_specs=[smem,                      # seed (scalar)
                  vmem, vmem,                # u indices, i indices  (B, 1) int32
                  vmem, vmem, vmem,          # users, item_features, A_hat
                  vmem, vmem, vmem, vmem],   # w1, b1, w2, b2
        out_specs=vmem,
    )(seed,
      u.reshape(batch, 1).astype(jnp.int32),
      i.reshape(batch, 1).astype(jnp.int32),
      params["users"], params["item_features"], a_hat,
      params["w1"], params["b1"], params["w2"], params["b2"])
    return out[0]


def make_synthetic_adjacency(key, n):
    a = jax.random.bernoulli(key, 0.1, (n, n)).astype(jnp.float32)
    a = jnp.maximum(a, a.T)                   # symmetric graph
    a = jnp.maximum(a, jnp.eye(n))            # self loops (GCNConv default)
    deg = jnp.sum(a, axis=1)
    dinv = 1.0 / jnp.sqrt(deg)
    return dinv[:, None] * a * dinv[None, :]  # D^-1/2 (A+I) D^-1/2


if __name__ == "__main__":
    # Small, deterministic configuration.
    n_users = 32
    n_item_features = 64
    dim = 32
    hidden_dim = 64
    batch = 8

    key = jax.random.PRNGKey(0)
    k_u, k_if, k_w1, k_b1, k_w2, k_b2, k_adj, k_idx_u, k_idx_i = jax.random.split(key, 9)

    params = {
        "users": jax.random.normal(k_u, (n_users, dim), jnp.float32),
        "item_features": jax.random.normal(k_if, (n_item_features, dim), jnp.float32),
        "w1": 0.1 * jax.random.normal(k_w1, (dim, hidden_dim), jnp.float32),
        "b1": 0.1 * jax.random.normal(k_b1, (1, hidden_dim), jnp.float32),
        "w2": 0.1 * jax.random.normal(k_w2, (hidden_dim, dim), jnp.float32),
        "b2": 0.1 * jax.random.normal(k_b2, (1, dim), jnp.float32),
    }

    a_hat = make_synthetic_adjacency(k_adj, n_item_features)

    u = jax.random.randint(k_idx_u, (batch,), 0, n_users, dtype=jnp.int32)
    i = jax.random.randint(k_idx_i, (batch,), 0, n_item_features, dtype=jnp.int32)
    seed = jnp.array([0], dtype=jnp.int32)   # deterministic dropout seed

    logit = gcn4rec_forward(params, a_hat, u, i, seed)
    logit = jax.block_until_ready(logit)

    assert logit.shape == (batch,)
    assert bool(jnp.all(jnp.isfinite(logit)))
    assert bool(jnp.all((logit >= 0.0) & (logit <= 1.0)))
    print("KERNEL_OK")
</pallas_src>

<mosaic_0001>
module attributes {stable_mosaic.version = 11 : i64} {
  func.func @gcn4rec_fused_kernel(%arg0: memref<1xi32, #tpu.memory_space<smem>>, %arg1: memref<8x1xi32, #tpu.memory_space<vmem>>, %arg2: memref<8x1xi32, #tpu.memory_space<vmem>>, %arg3: memref<32x32xf32, #tpu.memory_space<vmem>>, %arg4: memref<64x32xf32, #tpu.memory_space<vmem>>, %arg5: memref<64x64xf32, #tpu.memory_space<vmem>>, %arg6: memref<32x64xf32, #tpu.memory_space<vmem>>, %arg7: memref<1x64xf32, #tpu.memory_space<vmem>>, %arg8: memref<64x32xf32, #tpu.memory_space<vmem>>, %arg9: memref<1x32xf32, #tpu.memory_space<vmem>>, %arg10: memref<1x8xf32, #tpu.memory_space<vmem>>) attributes {dimension_semantics = [], scalar_prefetch = 0 : i64, scratch_operands = 0 : i64, tpu.core_type = #tpu.core_type<tc>} {
    %c0 = arith.constant 0 : index
    %c0_0 = arith.constant 0 : index
    %0 = vector.load %arg4[%c0, %c0_0] : memref<64x32xf32, #tpu.memory_space<vmem>>, vector<64x32xf32>
    %1 = arith.mulf %0, %0 : vector<64x32xf32>
    %cst = arith.constant dense<0.000000e+00> : vector<64xf32>
    %2 = vector.multi_reduction <add>, %1, %cst [1] : vector<64x32xf32> to vector<64xf32>
    %3 = vector.shape_cast %2 : vector<64xf32> to vector<64x1xf32>
    %cst_1 = arith.constant 1.000000e+00 : f32
    %4 = vector.broadcast %cst_1 : f32 to vector<64x1xf32>
    %5 = arith.cmpf ogt, %3, %4 : vector<64x1xf32>
    %cst_2 = arith.constant 9.99999996E-13 : f32
    %6 = vector.broadcast %cst_2 : f32 to vector<64x1xf32>
    %7 = arith.addf %3, %6 : vector<64x1xf32>
    %8 = math.rsqrt %7 : vector<64x1xf32>
    %cst_3 = arith.constant 1.000000e+00 : f32
    %9 = vector.broadcast %cst_3 : f32 to vector<64x1xf32>
    %10 = arith.select %5, %8, %9 : vector<64x1xi1>, vector<64x1xf32>
    %11 = vector.broadcast %10 : vector<64x1xf32> to vector<64x32xf32>
    %12 = arith.mulf %0, %11 : vector<64x32xf32>
    %c0_4 = arith.constant 0 : index
    %c0_5 = arith.constant 0 : index
    %13 = vector.load %arg5[%c0_4, %c0_5] : memref<64x64xf32, #tpu.memory_space<vmem>>, vector<64x64xf32>
    %14 = arith.truncf %13 : vector<64x64xf32> to vector<64x64xbf16>
    %15 = arith.truncf %12 : vector<64x32xf32> to vector<64x32xbf16>
    %c0_6 = arith.constant 0 : index
    %c0_7 = arith.constant 0 : index
    %16 = vector.load %arg6[%c0_6, %c0_7] : memref<32x64xf32, #tpu.memory_space<vmem>>, vector<32x64xf32>
    %17 = arith.truncf %16 : vector<32x64xf32> to vector<32x64xbf16>
    %cst_8 = arith.constant dense<0.000000e+00> : vector<64x64xf32>
    %18 = tpu.matmul %15, %17, %cst_8 {dimension_numbers = #tpu.dot_dimension_numbers<[1], [0], [0], [1], [0, 0, 1, 1], [], []>} : vector<64x32xbf16>, vector<32x64xbf16>, vector<64x64xf32> -> vector<64x64xf32>
    %19 = arith.truncf %18 : vector<64x64xf32> to vector<64x64xbf16>
    %cst_9 = arith.constant dense<0.000000e+00> : vector<64x64xf32>
    %20 = tpu.matmul %14, %19, %cst_9 {dimension_numbers = #tpu.dot_dimension_numbers<[1], [0], [0], [1], [0, 0, 1, 1], [], []>} : vector<64x64xbf16>, vector<64x64xbf16>, vector<64x64xf32> -> vector<64x64xf32>
    %c0_10 = arith.constant 0 : index
    %c0_11 = arith.constant 0 : index
    %21 = vector.load %arg7[%c0_10, %c0_11] : memref<1x64xf32, #tpu.memory_space<vmem>>, vector<1x64xf32>
    %22 = vector.broadcast %21 : vector<1x64xf32> to vector<64x64xf32>
    %23 = arith.addf %20, %22 : vector<64x64xf32>
    %cst_12 = arith.constant 0.000000e+00 : f32
    %24 = vector.broadcast %cst_12 : f32 to vector<64x64xf32>
    %25 = arith.maximumf %23, %24 : vector<64x64xf32>
    %c0_13 = arith.constant 0 : index
    %26 = memref.load %arg0[%c0_13] : memref<1xi32, #tpu.memory_space<smem>>
    %27 = tpu.iota {dimensions = array<i32: 0>} : vector<64x64xi32>
    %28 = tpu.iota {dimensions = array<i32: 1>} : vector<64x64xi32>
    %c64_i32 = arith.constant 64 : i32
    %29 = vector.broadcast %c64_i32 : i32 to vector<64x64xi32>
    %30 = arith.muli %27, %29 : vector<64x64xi32>
    %31 = arith.addi %30, %28 : vector<64x64xi32>
    %c1103515245_i32 = arith.constant 1103515245 : i32
    %32 = vector.broadcast %c1103515245_i32 : i32 to vector<64x64xi32>
    %33 = arith.muli %31, %32 : vector<64x64xi32>
    %c747796405_i32 = arith.constant 747796405 : i32
    %34 = arith.muli %26, %c747796405_i32 : i32
    %35 = vector.broadcast %34 : i32 to vector<64x64xi32>
    %36 = arith.addi %33, %35 : vector<64x64xi32>
    %c1013904223_i32 = arith.constant 1013904223 : i32
    %37 = vector.broadcast %c1013904223_i32 : i32 to vector<64x64xi32>
    %38 = arith.addi %36, %37 : vector<64x64xi32>
    %c13_i32 = arith.constant 13 : i32
    %39 = vector.broadcast %c13_i32 : i32 to vector<64x64xi32>
    %40 = arith.shrsi %38, %39 : vector<64x64xi32>
    %41 = arith.xori %38, %40 : vector<64x64xi32>
    %c1664525_i32 = arith.constant 1664525 : i32
    %42 = vector.broadcast %c1664525_i32 : i32 to vector<64x64xi32>
    %43 = arith.muli %41, %42 : vector<64x64xi32>
    %c1013904223_i32_14 = arith.constant 1013904223 : i32
    %44 = vector.broadcast %c1013904223_i32_14 : i32 to vector<64x64xi32>
    %45 = arith.addi %43, %44 : vector<64x64xi32>
    %c17_i32 = arith.constant 17 : i32
    %46 = vector.broadcast %c17_i32 : i32 to vector<64x64xi32>
    %47 = arith.shrsi %45, %46 : vector<64x64xi32>
    %48 = arith.xori %45, %47 : vector<64x64xi32>
    %c0_i32 = arith.constant 0 : i32
    %49 = vector.broadcast %c0_i32 : i32 to vector<64x64xi32>
    %50 = arith.cmpi slt, %48, %49 : vector<64x64xi32>
    %cst_15 = arith.constant 2.000000e+00 : f32
    %51 = vector.broadcast %cst_15 : f32 to vector<64x64xf32>
    %52 = arith.mulf %25, %51 : vector<64x64xf32>
    %cst_16 = arith.constant 0.000000e+00 : f32
    %53 = vector.broadcast %cst_16 : f32 to vector<64x64xf32>
    %54 = arith.select %50, %52, %53 : vector<64x64xi1>, vector<64x64xf32>
    %55 = arith.truncf %54 : vector<64x64xf32> to vector<64x64xbf16>
    %c0_17 = arith.constant 0 : index
    %c0_18 = arith.constant 0 : index
    %56 = vector.load %arg8[%c0_17, %c0_18] : memref<64x32xf32, #tpu.memory_space<vmem>>, vector<64x32xf32>
    %57 = arith.truncf %56 : vector<64x32xf32> to vector<64x32xbf16>
    %cst_19 = arith.constant dense<0.000000e+00> : vector<64x32xf32>
    %58 = tpu.matmul %55, %57, %cst_19 {dimension_numbers = #tpu.dot_dimension_numbers<[1], [0], [0], [1], [0, 0, 1, 1], [], []>} : vector<64x64xbf16>, vector<64x32xbf16>, vector<64x32xf32> -> vector<64x32xf32>
    %c0_20 = arith.constant 0 : index
    %c0_21 = arith.constant 0 : index
    %59 = vector.load %arg2[%c0_20, %c0_21] : memref<8x1xi32, #tpu.memory_space<vmem>>, vector<8x1xi32>
    %60 = tpu.iota {dimensions = array<i32: 1>} : vector<8x64xi32>
    %61 = vector.broadcast %59 : vector<8x1xi32> to vector<8x64xi32>
    %62 = arith.cmpi eq, %60, %61 : vector<8x64xi32>
    %cst_22 = arith.constant 1.000000e+00 : f32
    %cst_23 = arith.constant 0.000000e+00 : f32
    %63 = vector.broadcast %cst_22 : f32 to vector<8x64xf32>
    %64 = vector.broadcast %cst_23 : f32 to vector<8x64xf32>
    %65 = arith.select %62, %63, %64 : vector<8x64xi1>, vector<8x64xf32>
    %66 = arith.truncf %65 : vector<8x64xf32> to vector<8x64xbf16>
    %cst_24 = arith.constant dense<0.000000e+00> : vector<8x64xf32>
    %67 = tpu.matmul %66, %14, %cst_24 {dimension_numbers = #tpu.dot_dimension_numbers<[1], [0], [0], [1], [0, 0, 1, 1], [], []>} : vector<8x64xbf16>, vector<64x64xbf16>, vector<8x64xf32> -> vector<8x64xf32>
    %68 = arith.truncf %67 : vector<8x64xf32> to vector<8x64xbf16>
    %69 = arith.truncf %58 : vector<64x32xf32> to vector<64x32xbf16>
    %cst_25 = arith.constant dense<0.000000e+00> : vector<8x32xf32>
    %70 = tpu.matmul %68, %69, %cst_25 {dimension_numbers = #tpu.dot_dimension_numbers<[1], [0], [0], [1], [0, 0, 1, 1], [], []>} : vector<8x64xbf16>, vector<64x32xbf16>, vector<8x32xf32> -> vector<8x32xf32>
    %c0_26 = arith.constant 0 : index
    %c0_27 = arith.constant 0 : index
    %71 = vector.load %arg9[%c0_26, %c0_27] : memref<1x32xf32, #tpu.memory_space<vmem>>, vector<1x32xf32>
    %72 = vector.broadcast %71 : vector<1x32xf32> to vector<8x32xf32>
    %73 = arith.addf %70, %72 : vector<8x32xf32>
    %c0_28 = arith.constant 0 : index
    %c0_29 = arith.constant 0 : index
    %74 = vector.load %arg1[%c0_28, %c0_29] : memref<8x1xi32, #tpu.memory_space<vmem>>, vector<8x1xi32>
    %75 = tpu.iota {dimensions = array<i32: 1>} : vector<8x32xi32>
    %76 = vector.broadcast %74 : vector<8x1xi32> to vector<8x32xi32>
    %77 = arith.cmpi eq, %75, %76 : vector<8x32xi32>
    %cst_30 = arith.constant 1.000000e+00 : f32
    %cst_31 = arith.constant 0.000000e+00 : f32
    %78 = vector.broadcast %cst_30 : f32 to vector<8x32xf32>
    %79 = vector.broadcast %cst_31 : f32 to vector<8x32xf32>
    %80 = arith.select %77, %78, %79 : vector<8x32xi1>, vector<8x32xf32>
    %c0_32 = arith.constant 0 : index
    %c0_33 = arith.constant 0 : index
    %81 = vector.load %arg3[%c0_32, %c0_33] : memref<32x32xf32, #tpu.memory_space<vmem>>, vector<32x32xf32>
    %cst_34 = arith.constant dense<0.000000e+00> : vector<8x32xf32>
    %82 = tpu.matmul %80, %81, %cst_34 {dimension_numbers = #tpu.dot_dimension_numbers<[1], [0], [0], [1], [0, 0, 1, 1], [], []>} : vector<8x32xf32>, vector<32x32xf32>, vector<8x32xf32> -> vector<8x32xf32>
    %83 = arith.mulf %82, %82 : vector<8x32xf32>
    %cst_35 = arith.constant dense<0.000000e+00> : vector<8xf32>
    %84 = vector.multi_reduction <add>, %83, %cst_35 [1] : vector<8x32xf32> to vector<8xf32>
    %85 = vector.shape_cast %84 : vector<8xf32> to vector<8x1xf32>
    %cst_36 = arith.constant 1.000000e+00 : f32
    %86 = vector.broadcast %cst_36 : f32 to vector<8x1xf32>
    %87 = arith.cmpf ogt, %85, %86 : vector<8x1xf32>
    %cst_37 = arith.constant 9.99999996E-13 : f32
    %88 = vector.broadcast %cst_37 : f32 to vector<8x1xf32>
    %89 = arith.addf %85, %88 : vector<8x1xf32>
    %90 = math.rsqrt %89 : vector<8x1xf32>
    %cst_38 = arith.constant 1.000000e+00 : f32
    %91 = vector.broadcast %cst_38 : f32 to vector<8x1xf32>
    %92 = arith.select %87, %90, %91 : vector<8x1xi1>, vector<8x1xf32>
    %93 = vector.broadcast %92 : vector<8x1xf32> to vector<8x32xf32>
    %94 = arith.mulf %82, %93 : vector<8x32xf32>
    %95 = tpu.transpose %73, [1, 0] : vector<8x32xf32> -> vector<32x8xf32>
    %cst_39 = arith.constant dense<0.000000e+00> : vector<8x8xf32>
    %96 = tpu.matmul %94, %95, %cst_39 {dimension_numbers = #tpu.dot_dimension_numbers<[1], [0], [0], [1], [0, 0, 1, 1], [], []>} : vector<8x32xf32>, vector<32x8xf32>, vector<8x8xf32> -> vector<8x8xf32>
    %97 = tpu.iota {dimensions = array<i32: 0>} : vector<8x8xi32>
    %98 = tpu.iota {dimensions = array<i32: 1>} : vector<8x8xi32>
    %99 = arith.cmpi eq, %97, %98 : vector<8x8xi32>
    %cst_40 = arith.constant 0.000000e+00 : f32
    %100 = vector.broadcast %cst_40 : f32 to vector<8x8xf32>
    %101 = arith.select %99, %96, %100 : vector<8x8xi1>, vector<8x8xf32>
    %cst_41 = arith.constant dense<0.000000e+00> : vector<8xf32>
    %102 = vector.multi_reduction <add>, %101, %cst_41 [0] : vector<8x8xf32> to vector<8xf32>
    %103 = vector.shape_cast %102 : vector<8xf32> to vector<1x8xf32>
    %104 = math.absf %103 : vector<1x8xf32>
    %cst_42 = arith.constant 0.000000e+00 : f32
    %105 = vector.broadcast %cst_42 : f32 to vector<1x8xf32>
    %106 = arith.subf %105, %104 : vector<1x8xf32>
    %107 = math.exp %106 : vector<1x8xf32>
    %cst_43 = arith.constant 1.000000e+00 : f32
    %108 = vector.broadcast %cst_43 : f32 to vector<1x8xf32>
    %109 = arith.addf %108, %107 : vector<1x8xf32>
    %cst_44 = arith.constant 1.000000e+00 : f32
    %110 = vector.broadcast %cst_44 : f32 to vector<1x8xf32>
    %111 = arith.divf %110, %109 : vector<1x8xf32>
    %cst_45 = arith.constant 0.000000e+00 : f32
    %112 = vector.broadcast %cst_45 : f32 to vector<1x8xf32>
    %113 = arith.cmpf oge, %103, %112 : vector<1x8xf32>
    %cst_46 = arith.constant 1.000000e+00 : f32
    %114 = vector.broadcast %cst_46 : f32 to vector<1x8xf32>
    %115 = arith.subf %114, %111 : vector<1x8xf32>
    %116 = arith.select %113, %111, %115 : vector<1x8xi1>, vector<1x8xf32>
    %c0_47 = arith.constant 0 : index
    %c0_48 = arith.constant 0 : index
    %117 = vector.load %arg10[%c0_47, %c0_48] : memref<1x8xf32, #tpu.memory_space<vmem>>, vector<1x8xf32>
    tpu.vector_store %arg10[%c0_47, %c0_48], %116 {strides = array<i32>} : memref<1x8xf32, #tpu.memory_space<vmem>>, vector<1x8xf32>,
    return
  }
}

</mosaic_0001>

<llo_original>
// kernel: tpu_custom_call.1
$region0: #{tpu_custom_call.1}
  #allocation0 [shape = 'u32[]', space=smem, size = 0x4, offset = 0x4, fixed_abs, tag = 'smem constant byte address 0x4 - core index']
  #allocation1 [shape = 'u32[144,128]{1,0:T(1,128)}', space=vmem, size = 0x12000, scoped, tag = 'internal scratch']
  #allocation2 [shape = 's32[1]{0:T(128)S(6)}', space=smem, size = 0x200, scoped, tag = 'scoped memory for tpu_custom_call.1']
  %s0 = inlined_call_operand.<no memory space> [shape: s32[1], index: 0, kind: input, shape index: {}]
  %s1 = inlined_call_operand.vmem [shape: s32[8,1], index: 1, kind: input, shape index: {}]
  %s2 = inlined_call_operand.vmem [shape: s32[8,1], index: 2, kind: input, shape index: {}]
  %s3 = inlined_call_operand.vmem [shape: f32[32,32], index: 3, kind: input, shape index: {}]
  %s4 = inlined_call_operand.vmem [shape: f32[64,32], index: 4, kind: input, shape index: {}]
  %s5 = inlined_call_operand.vmem [shape: f32[64,64], index: 5, kind: input, shape index: {}]
  %s6 = inlined_call_operand.vmem [shape: f32[32,64], index: 6, kind: input, shape index: {}]
  %s7 = inlined_call_operand.vmem [shape: f32[1,64], index: 7, kind: input, shape index: {}]
  %s8 = inlined_call_operand.vmem [shape: f32[64,32], index: 8, kind: input, shape index: {}]
  %s9 = inlined_call_operand.vmem [shape: f32[1,32], index: 9, kind: input, shape index: {}]
  %s10 = inlined_call_operand.hbm [shape: f32[1,8], index: 10, kind: output, shape index: {}]
  %s11 = sld [smem:[#allocation0]]
  $region50: #{tpu_custom_call.1} parent=0
    _
  %s13 = ssub.s32 1, %s11
  %s14 = scalar_select 0, %s13, %s11
  %15 = sst [smem:[#allocation2]] %s0
  $region1: #{tpu_custom_call.1} parent=0
    #allocation3 [shape = 'u8[512]{0}', space=vmem, size = 0x400, scoped, tag = 'output window, operand 0, single buffered']
    #allocation4 [shape = 's32[1]{0}', space=sflag, size = 0x4, scoped, tag = 'scoped memory for tpu_custom_call.1']
    %16 = vsyncpa [#allocation4], 0
    // Predicated region
    $region2: #{tpu_custom_call.1} parent=1 // pred_check
      _
    $region3: #{tpu_custom_call.1} parent=1 // pred_check_branch
      %18 = sbr.rel (0) target = $region5
    $region4: #{tpu_custom_call.1} parent=1 // pred_region
      _
    $region5: #{tpu_custom_call.1} parent=1 // pred_fallthru
      _
    // Predicated region
    $region6: #{tpu_custom_call.1} parent=1 // pred_check
      _
    $region7: #{tpu_custom_call.1} parent=1 // pred_check_branch
      %20 = sbr.rel (0) target = $region9
    $region8: #{tpu_custom_call.1} parent=1 // pred_region
      _
    $region9: #{tpu_custom_call.1} parent=1 // pred_fallthru
      _
    // Predicated region
    $region10: #{tpu_custom_call.1} parent=1 // pred_check
      _
    $region11: #{tpu_custom_call.1} parent=1 // pred_check_branch
      %22 = sbr.rel (0) target = $region13
    $region12: #{tpu_custom_call.1} parent=1 // pred_region
      _
    $region13: #{tpu_custom_call.1} parent=1 // pred_fallthru
      _
    // Predicated region
    $region14: #{tpu_custom_call.1} parent=1 // pred_check
      _
    $region15: #{tpu_custom_call.1} parent=1 // pred_check_branch
      %24 = sbr.rel (0) target = $region17
    $region16: #{tpu_custom_call.1} parent=1 // pred_region
      _
    $region17: #{tpu_custom_call.1} parent=1 // pred_fallthru
      _
    // Predicated region
    $region18: #{tpu_custom_call.1} parent=1 // pred_check
      _
    $region19: #{tpu_custom_call.1} parent=1 // pred_check_branch
      %26 = sbr.rel (0) target = $region21
    $region20: #{tpu_custom_call.1} parent=1 // pred_region
      _
    $region21: #{tpu_custom_call.1} parent=1 // pred_fallthru
      _
    // Predicated region
    $region22: #{tpu_custom_call.1} parent=1 // pred_check
      _
    $region23: #{tpu_custom_call.1} parent=1 // pred_check_branch
      %28 = sbr.rel (0) target = $region25
    $region24: #{tpu_custom_call.1} parent=1 // pred_region
      _
    $region25: #{tpu_custom_call.1} parent=1 // pred_fallthru
      _
    // Predicated region
    $region26: #{tpu_custom_call.1} parent=1 // pred_check
      _
    $region27: #{tpu_custom_call.1} parent=1 // pred_check_branch
      %30 = sbr.rel (0) target = $region29
    $region28: #{tpu_custom_call.1} parent=1 // pred_region
      _
    $region29: #{tpu_custom_call.1} parent=1 // pred_fallthru
      _
    // Predicated region
    $region30: #{tpu_custom_call.1} parent=1 // pred_check
      _
    $region31: #{tpu_custom_call.1} parent=1 // pred_check_branch
      %32 = sbr.rel (0) target = $region33
    $region32: #{tpu_custom_call.1} parent=1 // pred_region
      _
    $region33: #{tpu_custom_call.1} parent=1 // pred_fallthru
      _
    // Predicated region
    $region34: #{tpu_custom_call.1} parent=1 // pred_check
      _
    $region35: #{tpu_custom_call.1} parent=1 // pred_check_branch
      %34 = sbr.rel (0) target = $region37
    $region36: #{tpu_custom_call.1} parent=1 // pred_region
      _
    $region37: #{tpu_custom_call.1} parent=1 // pred_fallthru
      _
    // Predicated region
    $region38: #{tpu_custom_call.1} parent=1 // pred_check
      _
    $region39: #{tpu_custom_call.1} parent=1 // pred_check_branch
      %36 = sbr.rel (0) target = $region41
    $region40: #{tpu_custom_call.1} parent=1 // pred_region
      _
    $region41: #{tpu_custom_call.1} parent=1 // pred_fallthru
      _
    %v38 = vld [vmem:[%s4] sm:$0xff]
    %v39 = vld [vmem:[%s4 + $0x8] sm:$0xff]
    %v40 = vld [vmem:[%s4 + $0x10] sm:$0xff]
    %v41 = vld [vmem:[%s4 + $0x18] sm:$0xff]
    %v42 = vld [vmem:[%s4 + $0x20] sm:$0xff]
    %v43 = vld [vmem:[%s4 + $0x28] sm:$0xff]
    %v44 = vld [vmem:[%s4 + $0x30] sm:$0xff]
    %v45 = vld [vmem:[%s4 + $0x38] sm:$0xff]
    %v46 = vmul.f32 %v38, %v38
    %v47 = vmul.f32 %v39, %v39
    %v48 = vmul.f32 %v40, %v40
    %v49 = vmul.f32 %v41, %v41
    %v50 = vmul.f32 %v42, %v42
    %v51 = vmul.f32 %v43, %v43
    %v52 = vmul.f32 %v44, %v44
    %v53 = vmul.f32 %v45, %v45
    %vm54 = vcmask 261120
    %v55 = vsel %vm54, %v46, 0.0
    %56 = vadd.xlane.f32.xlu0 %v55
    %v57 = vpop.xlane.xlu0 %56
    %v58 = vsel %vm54, %v47, 0.0
    %59 = vadd.xlane.f32.xlu0 %v58
    %v60 = vpop.xlane.xlu0 %59
    %v61 = vsel %vm54, %v48, 0.0
    %62 = vadd.xlane.f32.xlu0 %v61
    %v63 = vpop.xlane.xlu0 %62
    %v64 = vsel %vm54, %v49, 0.0
    %65 = vadd.xlane.f32.xlu0 %v64
    %v66 = vpop.xlane.xlu0 %65
    %v67 = vsel %vm54, %v50, 0.0
    %68 = vadd.xlane.f32.xlu0 %v67
    %v69 = vpop.xlane.xlu0 %68
    %v70 = vsel %vm54, %v51, 0.0
    %71 = vadd.xlane.f32.xlu0 %v70
    %v72 = vpop.xlane.xlu0 %71
    %v73 = vsel %vm54, %v52, 0.0
    %74 = vadd.xlane.f32.xlu0 %v73
    %v75 = vpop.xlane.xlu0 %74
    %v76 = vsel %vm54, %v53, 0.0
    %77 = vadd.xlane.f32.xlu0 %v76
    %v78 = vpop.xlane.xlu0 %77
    %vm79 = vcmp.gt.f32.partialorder %v57, 1.0
    %vm80 = vcmp.gt.f32.partialorder %v60, 1.0
    %vm81 = vcmp.gt.f32.partialorder %v63, 1.0
    %vm82 = vcmp.gt.f32.partialorder %v66, 1.0
    %vm83 = vcmp.gt.f32.partialorder %v69, 1.0
    %vm84 = vcmp.gt.f32.partialorder %v72, 1.0
    %vm85 = vcmp.gt.f32.partialorder %v75, 1.0
    %vm86 = vcmp.gt.f32.partialorder %v78, 1.0
    %v87 = vadd.f32 %v57, 1e-12
    %v88 = vadd.f32 %v60, 1e-12
    %v89 = vadd.f32 %v63, 1e-12
    %v90 = vadd.f32 %v66, 1e-12
    %v91 = vadd.f32 %v69, 1e-12
    %v92 = vadd.f32 %v72, 1e-12
    %v93 = vadd.f32 %v75, 1e-12
    %v94 = vadd.f32 %v78, 1e-12
    %v95 = vrsqrt.pop %v87
    %v96 = vrsqrt.pop %v88
    %v97 = vrsqrt.pop %v89
    %v98 = vrsqrt.pop %v90
    %v99 = vrsqrt.pop %v91
    %v100 = vrsqrt.pop %v92
    %v101 = vrsqrt.pop %v93
    %v102 = vrsqrt.pop %v94
    %v103 = vsel %vm79, %v95, 1.0
    %v104 = vsel %vm80, %v96, 1.0
    %v105 = vsel %vm81, %v97, 1.0
    %v106 = vsel %vm82, %v98, 1.0
    %v107 = vsel %vm83, %v99, 1.0
    %v108 = vsel %vm84, %v100, 1.0
    %v109 = vsel %vm85, %v101, 1.0
    %v110 = vsel %vm86, %v102, 1.0
    %v111 = vmul.f32 %v38, %v103
    %v112 = vmul.f32 %v39, %v104
    %v113 = vmul.f32 %v40, %v105
    %v114 = vmul.f32 %v41, %v106
    %v115 = vmul.f32 %v42, %v107
    %v116 = vmul.f32 %v43, %v108
    %v117 = vmul.f32 %v44, %v109
    %v118 = vmul.f32 %v45, %v110
    %v119 = vld [vmem:[%s5] sm:$0xff]
    %v120 = vld [vmem:[%s5 + $0x8] sm:$0xff]
    %v121 = vld [vmem:[%s5 + $0x10] sm:$0xff]
    %v122 = vld [vmem:[%s5 + $0x18] sm:$0xff]
    %v123 = vld [vmem:[%s5 + $0x20] sm:$0xff]
    %v124 = vld [vmem:[%s5 + $0x28] sm:$0xff]
    %v125 = vld [vmem:[%s5 + $0x30] sm:$0xff]
    %v126 = vld [vmem:[%s5 + $0x38] sm:$0xff]
    %v127 = vpack.c.bf16 %v120, %v119
    %v128 = vpack.c.bf16 %v122, %v121
    %v129 = vpack.c.bf16 %v124, %v123
    %v130 = vpack.c.bf16 %v126, %v125
    %v131 = vpack.c.bf16 %v112, %v111
    %v132 = vpack.c.bf16 %v114, %v113
    %v133 = vpack.c.bf16 %v116, %v115
    %v134 = vpack.c.bf16 %v118, %v117
    %v135 = vld [vmem:[%s6] sm:$0xff]
    %v136 = vld [vmem:[%s6 + $0x8] sm:$0xff]
    %v137 = vld [vmem:[%s6 + $0x10] sm:$0xff]
    %v138 = vld [vmem:[%s6 + $0x18] sm:$0xff]
    %v139 = vpack.c.bf16 %v136, %v135
    %v140 = vpack.c.bf16 %v138, %v137
    %v142 = vsel %vm54, %v131, 0
    %v145 = vsel %vm54, %v132, 0
    %v148 = vsel %vm54, %v133, 0
    %v151 = vsel %vm54, %v134, 0
    %153 = vmatprep.subr.bf16.mxu0 0
    %154 = vmatpush1.bf16.msra.mxu0 %v139
    %155 = vmatprep.subr.bf16.mxu0 0
    %156 = vmatpush1.bf16.msra.mxu0 %v140
    %157 = vmatprep.subr.bf16.mxu0 0
    %158 = vmatpush1.bf16.msra.mxu0 0
    %159 = vmatprep.subr.bf16.mxu0 0
    %160 = vmatpush1.bf16.msra.mxu0 0
    %161 = vmatprep.subr.bf16.mxu0 0
    %162 = vmatpush1.bf16.msra.mxu0 0
    %163 = vmatprep.subr.bf16.mxu0 0
    %164 = vmatpush1.bf16.msra.mxu0 0
    %165 = vmatprep.subr.bf16.mxu0 0
    %166 = vmatpush1.bf16.msra.mxu0 0
    %167 = vmatprep.subr.bf16.mxu0 0
    %168 = vmatpush1.bf16.msra.mxu0 0
    %169 = vmatprep.subr.bf16.mxu0 0
    %170 = vmatpush1.bf16.msra.mxu0 0
    %171 = vmatprep.subr.bf16.mxu0 0
    %172 = vmatpush1.bf16.msra.mxu0 0
    %173 = vmatprep.subr.bf16.mxu0 0
    %174 = vmatpush1.bf16.msra.mxu0 0
    %175 = vmatprep.subr.bf16.mxu0 0
    %176 = vmatpush1.bf16.msra.mxu0 0
    %177 = vmatprep.subr.bf16.mxu0 0
    %178 = vmatpush1.bf16.msra.mxu0 0
    %179 = vmatprep.subr.bf16.mxu0 0
    %180 = vmatpush1.bf16.msra.mxu0 0
    %181 = vmatprep.subr.bf16.mxu0 0
    %182 = vmatpush1.bf16.msra.mxu0 0
    %183 = vmatprep.subr.bf16.mxu0 0
    %184 = vmatpush1.bf16.msra.mxu0 0
    %185 = vmatprep.mubr.bf16.mxu0 0
    %186 = vmatmul.mubr.bf16.gmra.mrb[0].mxu0 %v142
    %v187 = vpop.f32.mrb[0].mxu0
    %v188 = vadd.f32 0.0, %v187
    %v189 = vpop.f32.mrb[0].mxu0
    %v190 = vpop.f32.mrb[0].mxu0
    %v191 = vadd.f32 0.0, %v190
    %v192 = vpop.f32.mrb[0].mxu0
    %193 = vmatprep.mubr.bf16.mxu0 0
    %194 = vmatmul.mubr.bf16.gmra.mrb[0].mxu0 %v145
    %v195 = vpop.f32.mrb[0].mxu0
    %v196 = vadd.f32 0.0, %v195
    %v197 = vpop.f32.mrb[0].mxu0
    %v198 = vpop.f32.mrb[0].mxu0
    %v199 = vadd.f32 0.0, %v198
    %v200 = vpop.f32.mrb[0].mxu0
    %201 = vmatprep.mubr.bf16.mxu0 0
    %202 = vmatmul.mubr.bf16.gmra.mrb[0].mxu0 %v148
    %v203 = vpop.f32.mrb[0].mxu0
    %v204 = vadd.f32 0.0, %v203
    %v205 = vpop.f32.mrb[0].mxu0
    %v206 = vpop.f32.mrb[0].mxu0
    %v207 = vadd.f32 0.0, %v206
    %v208 = vpop.f32.mrb[0].mxu0
    %209 = vmatprep.mubr.bf16.mxu0 0
    %210 = vmatmul.mubr.bf16.gmra.mrb[0].mxu0 %v151
    %v211 = vpop.f32.mrb[0].mxu0
    %v212 = vadd.f32 0.0, %v211
    %v213 = vpop.f32.mrb[0].mxu0
    %v214 = vpop.f32.mrb[0].mxu0
    %v215 = vadd.f32 0.0, %v214
    %v216 = vpop.f32.mrb[0].mxu0
    %217 = vdwg.mxu0
    %v218 = vpack.c.bf16 %v191, %v188
    %v219 = vpack.c.bf16 %v199, %v196
    %v220 = vpack.c.bf16 %v207, %v204
    %v221 = vpack.c.bf16 %v215, %v212
    %v222 = vld [vmem:[%s7] sm:$0x1]
    %v224 = vlaneseq
    %v225 = vshrl.u32 %v224, 7
    %v226 = vsub.s32 0, %v225
    %v227 = vrot.slane %v222, %v226
    %vm229 = vcmask 523264
    %v231 = vsel %vm229, %v127, 0
    %v234 = vsel %vm229, %v128, 0
    %v237 = vsel %vm229, %v129, 0
    %v240 = vsel %vm229, %v130, 0
    %242 = vmatprep.subr.bf16.mxu0 0
    %243 = vmatpush1.bf16.msra.mxu0 %v218
    %244 = vmatprep.subr.bf16.mxu0 0
    %245 = vmatpush1.bf16.msra.mxu0 %v219
    %246 = vmatprep.subr.bf16.mxu0 0
    %247 = vmatpush1.bf16.msra.mxu0 %v220
    %248 = vmatprep.subr.bf16.mxu0 0
    %249 = vmatpush1.bf16.msra.mxu0 %v221
    %250 = vmatprep.subr.bf16.mxu0 0
    %251 = vmatpush1.bf16.msra.mxu0 0
    %252 = vmatprep.subr.bf16.mxu0 0
    %253 = vmatpush1.bf16.msra.mxu0 0
    %254 = vmatprep.subr.bf16.mxu0 0
    %255 = vmatpush1.bf16.msra.mxu0 0
    %256 = vmatprep.subr.bf16.mxu0 0
    %257 = vmatpush1.bf16.msra.mxu0 0
    %258 = vmatprep.subr.bf16.mxu0 0
    %259 = vmatpush1.bf16.msra.mxu0 0
    %260 = vmatprep.subr.bf16.mxu0 0
    %261 = vmatpush1.bf16.msra.mxu0 0
    %262 = vmatprep.subr.bf16.mxu0 0
    %263 = vmatpush1.bf16.msra.mxu0 0
    %264 = vmatprep.subr.bf16.mxu0 0
    %265 = vmatpush1.bf16.msra.mxu0 0
    %266 = vmatprep.subr.bf16.mxu0 0
    %267 = vmatpush1.bf16.msra.mxu0 0
    %268 = vmatprep.subr.bf16.mxu0 0
    %269 = vmatpush1.bf16.msra.mxu0 0
    %270 = vmatprep.subr.bf16.mxu0 0
    %271 = vmatpush1.bf16.msra.mxu0 0
    %272 = vmatprep.subr.bf16.mxu0 0
    %273 = vmatpush1.bf16.msra.mxu0 0
    %274 = vmatprep.mubr.bf16.mxu0 0
    %275 = vmatmul.mubr.bf16.gmra.mrb[0].mxu0 %v231
    %v276 = vpop.f32.mrb[0].mxu0
    %v277 = vadd.f32 %v227, %v276
    %v278 = vpop.f32.mrb[0].mxu0
    %v279 = vpop.f32.mrb[0].mxu0
    %v280 = vadd.f32 %v227, %v279
    %v281 = vpop.f32.mrb[0].mxu0
    %282 = vmatprep.mubr.bf16.mxu0 0
    %283 = vmatmul.mubr.bf16.gmra.mrb[0].mxu0 %v234
    %v284 = vpop.f32.mrb[0].mxu0
    %v285 = vadd.f32 %v227, %v284
    %v286 = vpop.f32.mrb[0].mxu0
    %v287 = vpop.f32.mrb[0].mxu0
    %v288 = vadd.f32 %v227, %v287
    %v289 = vpop.f32.mrb[0].mxu0
    %290 = vmatprep.mubr.bf16.mxu0 0
    %291 = vmatmul.mubr.bf16.gmra.mrb[0].mxu0 %v237
    %v292 = vpop.f32.mrb[0].mxu0
    %v293 = vadd.f32 %v227, %v292
    %v294 = vpop.f32.mrb[0].mxu0
    %v295 = vpop.f32.mrb[0].mxu0
    %v296 = vadd.f32 %v227, %v295
    %v297 = vpop.f32.mrb[0].mxu0
    %298 = vmatprep.mubr.bf16.mxu0 0
    %299 = vmatmul.mubr.bf16.gmra.mrb[0].mxu0 %v240
    %v300 = vpop.f32.mrb[0].mxu0
    %v301 = vadd.f32 %v227, %v300
    %v302 = vpop.f32.mrb[0].mxu0
    %v303 = vpop.f32.mrb[0].mxu0
    %v304 = vadd.f32 %v227, %v303
    %v305 = vpop.f32.mrb[0].mxu0
    %306 = vdwg.mxu0
    %v307 = vmax.f32 %v277, 0.0
    %v308 = vmax.f32 %v280, 0.0
    %v309 = vmax.f32 %v285, 0.0
    %v310 = vmax.f32 %v288, 0.0
    %v311 = vmax.f32 %v293, 0.0
    %v312 = vmax.f32 %v296, 0.0
    %v313 = vmax.f32 %v301, 0.0
    %v314 = vmax.f32 %v304, 0.0
    %s315 = sld [smem:[#allocation2]]
    %v316 = vlaneseq
    %v317 = vshrl.u32 %v316, 7
    %v318 = vadd.s32 %v317, 8
    %v319 = vadd.s32 %v317, 16
    %v320 = vadd.s32 %v317, 24
    %v321 = vadd.s32 %v317, 32
    %v322 = vadd.s32 %v317, 40
    %v323 = vadd.s32 %v317, 48
    %v324 = vadd.s32 %v317, 56
    %v325 = vlaneseq
    %v326 = vand.u32 %v325, 127
    %v327 = vmul.u32 %v317, 64
    %v328 = vmul.u32 %v318, 64
    %v329 = vmul.u32 %v319, 64
    %v330 = vmul.u32 %v320, 64
    %v331 = vmul.u32 %v321, 64
    %v332 = vmul.u32 %v322, 64
    %v333 = vmul.u32 %v323, 64
    %v334 = vmul.u32 %v324, 64
    %v335 = vadd.s32 %v327, %v326
    %v336 = vadd.s32 %v328, %v326
    %v337 = vadd.s32 %v329, %v326
    %v338 = vadd.s32 %v330, %v326
    %v339 = vadd.s32 %v331, %v326
    %v340 = vadd.s32 %v332, %v326
    %v341 = vadd.s32 %v333, %v326
    %v342 = vadd.s32 %v334, %v326
    %v343 = vmul.u32 %v335, 1103515245
    %v344 = vmul.u32 %v336, 1103515245
    %v345 = vmul.u32 %v337, 1103515245
    %v346 = vmul.u32 %v338, 1103515245
    %v347 = vmul.u32 %v339, 1103515245
    %v348 = vmul.u32 %v340, 1103515245
    %v349 = vmul.u32 %v341, 1103515245
    %v350 = vmul.u32 %v342, 1103515245
    %s351 = smul.u32 %s315, 747796405
    %v352 = vstv %s351
    %v353 = vadd.s32 %v343, %v352
    %v354 = vadd.s32 %v344, %v352
    %v355 = vadd.s32 %v345, %v352
    %v356 = vadd.s32 %v346, %v352
    %v357 = vadd.s32 %v347, %v352
    %v358 = vadd.s32 %v348, %v352
    %v359 = vadd.s32 %v349, %v352
    %v360 = vadd.s32 %v350, %v352
    %v361 = vadd.s32 %v353, 1013904223
    %v362 = vadd.s32 %v354, 1013904223
    %v363 = vadd.s32 %v355, 1013904223
    %v364 = vadd.s32 %v356, 1013904223
    %v365 = vadd.s32 %v357, 1013904223
    %v366 = vadd.s32 %v358, 1013904223
    %v367 = vadd.s32 %v359, 1013904223
    %v368 = vadd.s32 %v360, 1013904223
    %v369 = vshra.s32 %v361, 13
    %v370 = vshra.s32 %v362, 13
    %v371 = vshra.s32 %v363, 13
    %v372 = vshra.s32 %v364, 13
    %v373 = vshra.s32 %v365, 13
    %v374 = vshra.s32 %v366, 13
    %v375 = vshra.s32 %v367, 13
    %v376 = vshra.s32 %v368, 13
    %v377 = vxor.u32 %v361, %v369
    %v378 = vxor.u32 %v362, %v370
    %v379 = vxor.u32 %v363, %v371
    %v380 = vxor.u32 %v364, %v372
    %v381 = vxor.u32 %v365, %v373
    %v382 = vxor.u32 %v366, %v374
    %v383 = vxor.u32 %v367, %v375
    %v384 = vxor.u32 %v368, %v376
    %v385 = vmul.u32 %v377, 1664525
    %v386 = vmul.u32 %v378, 1664525
    %v387 = vmul.u32 %v379, 1664525
    %v388 = vmul.u32 %v380, 1664525
    %v389 = vmul.u32 %v381, 1664525
    %v390 = vmul.u32 %v382, 1664525
    %v391 = vmul.u32 %v383, 1664525
    %v392 = vmul.u32 %v384, 1664525
    %v393 = vadd.s32 %v385, 1013904223
    %v394 = vadd.s32 %v386, 1013904223
    %v395 = vadd.s32 %v387, 1013904223
    %v396 = vadd.s32 %v388, 1013904223
    %v397 = vadd.s32 %v389, 1013904223
    %v398 = vadd.s32 %v390, 1013904223
    %v399 = vadd.s32 %v391, 1013904223
    %v400 = vadd.s32 %v392, 1013904223
    %v401 = vshra.s32 %v393, 17
    %v402 = vshra.s32 %v394, 17
    %v403 = vshra.s32 %v395, 17
    %v404 = vshra.s32 %v396, 17
    %v405 = vshra.s32 %v397, 17
    %v406 = vshra.s32 %v398, 17
    %v407 = vshra.s32 %v399, 17
    %v408 = vshra.s32 %v400, 17
    %v409 = vxor.u32 %v393, %v401
    %v410 = vxor.u32 %v394, %v402
    %v411 = vxor.u32 %v395, %v403
    %v412 = vxor.u32 %v396, %v404
    %v413 = vxor.u32 %v397, %v405
    %v414 = vxor.u32 %v398, %v406
    %v415 = vxor.u32 %v399, %v407
    %v416 = vxor.u32 %v400, %v408
    %vm417 = vcmp.lt.s32.totalorder %v409, 0
    %vm418 = vcmp.lt.s32.totalorder %v410, 0
    %vm419 = vcmp.lt.s32.totalorder %v411, 0
    %vm420 = vcmp.lt.s32.totalorder %v412, 0
    %vm421 = vcmp.lt.s32.totalorder %v413, 0
    %vm422 = vcmp.lt.s32.totalorder %v414, 0
    %vm423 = vcmp.lt.s32.totalorder %v415, 0
    %vm424 = vcmp.lt.s32.totalorder %v416, 0
    %v425 = vmul.f32 %v307, 2.0
    %v426 = vmul.f32 %v308, 2.0
    %v427 = vmul.f32 %v309, 2.0
    %v428 = vmul.f32 %v310, 2.0
    %v429 = vmul.f32 %v311, 2.0
    %v430 = vmul.f32 %v312, 2.0
    %v431 = vmul.f32 %v313, 2.0
    %v432 = vmul.f32 %v314, 2.0
    %v433 = vsel %vm417, %v425, 0.0
    %v434 = vsel %vm418, %v426, 0.0
    %v435 = vsel %vm419, %v427, 0.0
    %v436 = vsel %vm420, %v428, 0.0
    %v437 = vsel %vm421, %v429, 0.0
    %v438 = vsel %vm422, %v430, 0.0
    %v439 = vsel %vm423, %v431, 0.0
    %v440 = vsel %vm424, %v432, 0.0
    %v441 = vpack.c.bf16 %v434, %v433
    %v442 = vpack.c.bf16 %v436, %v435
    %v443 = vpack.c.bf16 %v438, %v437
    %v444 = vpack.c.bf16 %v440, %v439
    %v445 = vld [vmem:[%s8] sm:$0xff]
    %v446 = vld [vmem:[%s8 + $0x8] sm:$0xff]
    %v447 = vld [vmem:[%s8 + $0x10] sm:$0xff]
    %v448 = vld [vmem:[%s8 + $0x18] sm:$0xff]
    %v449 = vld [vmem:[%s8 + $0x20] sm:$0xff]
    %v450 = vld [vmem:[%s8 + $0x28] sm:$0xff]
    %v451 = vld [vmem:[%s8 + $0x30] sm:$0xff]
    %v452 = vld [vmem:[%s8 + $0x38] sm:$0xff]
    %v453 = vpack.c.bf16 %v446, %v445
    %v454 = vpack.c.bf16 %v448, %v447
    %v455 = vpack.c.bf16 %v450, %v449
    %v456 = vpack.c.bf16 %v452, %v451
    %v458 = vsel %vm229, %v441, 0
    %v461 = vsel %vm229, %v442, 0
    %v464 = vsel %vm229, %v443, 0
    %v467 = vsel %vm229, %v444, 0
    %469 = vmatprep.subr.bf16.mxu0 0
    %470 = vmatpush1.bf16.msra.mxu0 %v453
    %471 = vmatprep.subr.bf16.mxu0 0
    %472 = vmatpush1.bf16.msra.mxu0 %v454
    %473 = vmatprep.subr.bf16.mxu0 0
    %474 = vmatpush1.bf16.msra.mxu0 %v455
    %475 = vmatprep.subr.bf16.mxu0 0
    %476 = vmatpush1.bf16.msra.mxu0 %v456
    %477 = vmatprep.subr.bf16.mxu0 0
    %478 = vmatpush1.bf16.msra.mxu0 0
    %479 = vmatprep.subr.bf16.mxu0 0
    %480 = vmatpush1.bf16.msra.mxu0 0
    %481 = vmatprep.subr.bf16.mxu0 0
    %482 = vmatpush1.bf16.msra.mxu0 0
    %483 = vmatprep.subr.bf16.mxu0 0
    %484 = vmatpush1.bf16.msra.mxu0 0
    %485 = vmatprep.subr.bf16.mxu0 0
    %486 = vmatpush1.bf16.msra.mxu0 0
    %487 = vmatprep.subr.bf16.mxu0 0
    %488 = vmatpush1.bf16.msra.mxu0 0
    %489 = vmatprep.subr.bf16.mxu0 0
    %490 = vmatpush1.bf16.msra.mxu0 0
    %491 = vmatprep.subr.bf16.mxu0 0
    %492 = vmatpush1.bf16.msra.mxu0 0
    %493 = vmatprep.subr.bf16.mxu0 0
    %494 = vmatpush1.bf16.msra.mxu0 0
    %495 = vmatprep.subr.bf16.mxu0 0
    %496 = vmatpush1.bf16.msra.mxu0 0
    %497 = vmatprep.subr.bf16.mxu0 0
    %498 = vmatpush1.bf16.msra.mxu0 0
    %499 = vmatprep.subr.bf16.mxu0 0
    %500 = vmatpush1.bf16.msra.mxu0 0
    %501 = vmatprep.mubr.bf16.mxu0 0
    %502 = vmatmul.mubr.bf16.gmra.mrb[0].mxu0 %v458
    %v503 = vpop.f32.mrb[0].mxu0
    %v504 = vadd.f32 0.0, %v503
    %v505 = vpop.f32.mrb[0].mxu0
    %v506 = vpop.f32.mrb[0].mxu0
    %v507 = vadd.f32 0.0, %v506
    %v508 = vpop.f32.mrb[0].mxu0
    %509 = vmatprep.mubr.bf16.mxu0 0
    %510 = vmatmul.mubr.bf16.gmra.mrb[0].mxu0 %v461
    %v511 = vpop.f32.mrb[0].mxu0
    %v512 = vadd.f32 0.0, %v511
    %v513 = vpop.f32.mrb[0].mxu0
    %v514 = vpop.f32.mrb[0].mxu0
    %v515 = vadd.f32 0.0, %v514
    %v516 = vpop.f32.mrb[0].mxu0
    %517 = vmatprep.mubr.bf16.mxu0 0
    %518 = vmatmul.mubr.bf16.gmra.mrb[0].mxu0 %v464
    %v519 = vpop.f32.mrb[0].mxu0
    %v520 = vadd.f32 0.0, %v519
    %v521 = vpop.f32.mrb[0].mxu0
    %v522 = vpop.f32.mrb[0].mxu0
    %v523 = vadd.f32 0.0, %v522
    %v524 = vpop.f32.mrb[0].mxu0
    %525 = vmatprep.mubr.bf16.mxu0 0
    %526 = vmatmul.mubr.bf16.gmra.mrb[0].mxu0 %v467
    %v527 = vpop.f32.mrb[0].mxu0
    %v528 = vadd.f32 0.0, %v527
    %v529 = vpop.f32.mrb[0].mxu0
    %v530 = vpop.f32.mrb[0].mxu0
    %v531 = vadd.f32 0.0, %v530
    %v532 = vpop.f32.mrb[0].mxu0
    %533 = vdwg.mxu0
    %v534 = vld [vmem:[%s2] sm:$0xff]
    %535 = vset.pattern.permute.xlu0 0
    %536 = vperm.xlu0 %535, %v534
    %v537 = vpop.permute.xlu0 %536
    %vm538 = vcmp.eq.s32.totalorder %v326, %v537
    %v539 = vsel %vm538, 1.0, 0.0
    %v540 = vpack.c.bf16 %v539, %v539
    %v542 = vsel %vm229, %v540, 0
    %544 = vmatprep.subr.bf16.mxu0 0
    %545 = vmatpush1.bf16.msra.mxu0 %v127
    %546 = vmatprep.subr.bf16.mxu0 0
    %547 = vmatpush1.bf16.msra.mxu0 %v128
    %548 = vmatprep.subr.bf16.mxu0 0
    %549 = vmatpush1.bf16.msra.mxu0 %v129
    %550 = vmatprep.subr.bf16.mxu0 0
    %551 = vmatpush1.bf16.msra.mxu0 %v130
    %552 = vmatprep.subr.bf16.mxu0 0
    %553 = vmatpush1.bf16.msra.mxu0 0
    %554 = vmatprep.subr.bf16.mxu0 0
    %555 = vmatpush1.bf16.msra.mxu0 0
    %556 = vmatprep.subr.bf16.mxu0 0
    %557 = vmatpush1.bf16.msra.mxu0 0
    %558 = vmatprep.subr.bf16.mxu0 0
    %559 = vmatpush1.bf16.msra.mxu0 0
    %560 = vmatprep.subr.bf16.mxu0 0
    %561 = vmatpush1.bf16.msra.mxu0 0
    %562 = vmatprep.subr.bf16.mxu0 0
    %563 = vmatpush1.bf16.msra.mxu0 0
    %564 = vmatprep.subr.bf16.mxu0 0
    %565 = vmatpush1.bf16.msra.mxu0 0
    %566 = vmatprep.subr.bf16.mxu0 0
    %567 = vmatpush1.bf16.msra.mxu0 0
    %568 = vmatprep.subr.bf16.mxu0 0
    %569 = vmatpush1.bf16.msra.mxu0 0
    %570 = vmatprep.subr.bf16.mxu0 0
    %571 = vmatpush1.bf16.msra.mxu0 0
    %572 = vmatprep.subr.bf16.mxu0 0
    %573 = vmatpush1.bf16.msra.mxu0 0
    %574 = vmatprep.subr.bf16.mxu0 0
    %575 = vmatpush1.bf16.msra.mxu0 0
    %576 = vmatprep.mubr.bf16.mxu0 0
    %577 = vmatmul.mubr.bf16.gmra.mrb[0].mxu0 %v542
    %v578 = vpop.f32.mrb[0].mxu0
    %v579 = vadd.f32 0.0, %v578
    %v580 = vpop.f32.mrb[0].mxu0
    %v581 = vpop.f32.mrb[0].mxu0
    %v582 = vpop.f32.mrb[0].mxu0
    %583 = vdwg.mxu0
    %v584 = vpack.c.bf16 %v579, %v579
    %v585 = vpack.c.bf16 %v507, %v504
    %v586 = vpack.c.bf16 %v515, %v512
    %v587 = vpack.c.bf16 %v523, %v520
    %v588 = vpack.c.bf16 %v531, %v528
    %v589 = vld [vmem:[%s9] sm:$0x1]
    %v591 = vlaneseq
    %v592 = vshrl.u32 %v591, 7
    %v593 = vsub.s32 0, %v592
    %v594 = vrot.slane %v589, %v593
    %v597 = vsel %vm229, %v584, 0
    %599 = vmatprep.subr.bf16.mxu0 0
    %600 = vmatpush1.bf16.msra.mxu0 %v585
    %601 = vmatprep.subr.bf16.mxu0 0
    %602 = vmatpush1.bf16.msra.mxu0 %v586
    %603 = vmatprep.subr.bf16.mxu0 0
    %604 = vmatpush1.bf16.msra.mxu0 %v587
    %605 = vmatprep.subr.bf16.mxu0 0
    %606 = vmatpush1.bf16.msra.mxu0 %v588
    %607 = vmatprep.subr.bf16.mxu0 0
    %608 = vmatpush1.bf16.msra.mxu0 0
    %609 = vmatprep.subr.bf16.mxu0 0
    %610 = vmatpush1.bf16.msra.mxu0 0
    %611 = vmatprep.subr.bf16.mxu0 0
    %612 = vmatpush1.bf16.msra.mxu0 0
    %613 = vmatprep.subr.bf16.mxu0 0
    %614 = vmatpush1.bf16.msra.mxu0 0
    %615 = vmatprep.subr.bf16.mxu0 0
    %616 = vmatpush1.bf16.msra.mxu0 0
    %617 = vmatprep.subr.bf16.mxu0 0
    %618 = vmatpush1.bf16.msra.mxu0 0
    %619 = vmatprep.subr.bf16.mxu0 0
    %620 = vmatpush1.bf16.msra.mxu0 0
    %621 = vmatprep.subr.bf16.mxu0 0
    %622 = vmatpush1.bf16.msra.mxu0 0
    %623 = vmatprep.subr.bf16.mxu0 0
    %624 = vmatpush1.bf16.msra.mxu0 0
    %625 = vmatprep.subr.bf16.mxu0 0
    %626 = vmatpush1.bf16.msra.mxu0 0
    %627 = vmatprep.subr.bf16.mxu0 0
    %628 = vmatpush1.bf16.msra.mxu0 0
    %629 = vmatprep.subr.bf16.mxu0 0
    %630 = vmatpush1.bf16.msra.mxu0 0
    %631 = vmatprep.mubr.bf16.mxu0 0
    %632 = vmatmul.mubr.bf16.gmra.mrb[0].mxu0 %v597
    %v633 = vpop.f32.mrb[0].mxu0
    %v634 = vadd.f32 %v594, %v633
    %v635 = vpop.f32.mrb[0].mxu0
    %v636 = vpop.f32.mrb[0].mxu0
    %v637 = vpop.f32.mrb[0].mxu0
    %638 = vdwg.mxu0
    %v639 = vld [vmem:[%s1] sm:$0xff]
    %640 = vset.pattern.permute.xlu0 0
    %641 = vperm.xlu0 %640, %v639
    %v642 = vpop.permute.xlu0 %641
    %vm643 = vcmp.eq.s32.totalorder %v326, %v642
    %v644 = vsel %vm643, 1.0, 0.0
    %v645 = vld [vmem:[%s3] sm:$0xff]
    %v646 = vld [vmem:[%s3 + $0x8] sm:$0xff]
    %v647 = vld [vmem:[%s3 + $0x10] sm:$0xff]
    %v648 = vld [vmem:[%s3 + $0x18] sm:$0xff]
    %v650 = vsel %vm54, %v644, 0
    %652 = vmatprep.subr.mxu0 0.0
    %653 = vmatpush1.msra.mxu0 %v645
    %654 = vmatprep.subr.mxu0 0.0
    %655 = vmatpush1.msra.mxu0 %v646
    %656 = vmatprep.subr.mxu0 0.0
    %657 = vmatpush1.msra.mxu0 %v647
    %658 = vmatprep.subr.mxu0 0.0
    %659 = vmatpush1.msra.mxu0 %v648
    %660 = vmatprep.subr.mxu0 0.0
    %661 = vmatpush1.msra.mxu0 0.0
    %662 = vmatprep.subr.mxu0 0.0
    %663 = vmatpush1.msra.mxu0 0.0
    %664 = vmatprep.subr.mxu0 0.0
    %665 = vmatpush1.msra.mxu0 0.0
    %666 = vmatprep.subr.mxu0 0.0
    %667 = vmatpush1.msra.mxu0 0.0
    %668 = vmatprep.subr.mxu0 0.0
    %669 = vmatpush1.msra.mxu0 0.0
    %670 = vmatprep.subr.mxu0 0.0
    %671 = vmatpush1.msra.mxu0 0.0
    %672 = vmatprep.subr.mxu0 0.0
    %673 = vmatpush1.msra.mxu0 0.0
    %674 = vmatprep.subr.mxu0 0.0
    %675 = vmatpush1.msra.mxu0 0.0
    %676 = vmatprep.subr.mxu0 0.0
    %677 = vmatpush1.msra.mxu0 0.0
    %678 = vmatprep.subr.mxu0 0.0
    %679 = vmatpush1.msra.mxu0 0.0
    %680 = vmatprep.subr.mxu0 0.0
    %681 = vmatpush1.msra.mxu0 0.0
    %682 = vmatprep.subr.mxu0 0.0
    %683 = vmatpush1.msra.mxu0 0.0
    %684 = vmatprep.subr.mxu0 0.0
    %685 = vmatpush1.msra.mxu0 0.0
    %686 = vmatprep.subr.mxu0 0.0
    %687 = vmatpush1.msra.mxu0 0.0
    %688 = vmatprep.subr.mxu0 0.0
    %689 = vmatpush1.msra.mxu0 0.0
    %690 = vmatprep.subr.mxu0 0.0
    %691 = vmatpush1.msra.mxu0 0.0
    %692 = vmatprep.subr.mxu0 0.0
    %693 = vmatpush1.msra.mxu0 0.0
    %694 = vmatprep.subr.mxu0 0.0
    %695 = vmatpush1.msra.mxu0 0.0
    %696 = vmatprep.subr.mxu0 0.0
    %697 = vmatpush1.msra.mxu0 0.0
    %698 = vmatprep.subr.mxu0 0.0
    %699 = vmatpush1.msra.mxu0 0.0
    %700 = vmatprep.subr.mxu0 0.0
    %701 = vmatpush1.msra.mxu0 0.0
    %702 = vmatprep.subr.mxu0 0.0
    %703 = vmatpush1.msra.mxu0 0.0
    %704 = vmatprep.subr.mxu0 0.0
    %705 = vmatpush1.msra.mxu0 0.0
    %706 = vmatprep.subr.mxu0 0.0
    %707 = vmatpush1.msra.mxu0 0.0
    %708 = vmatprep.subr.mxu0 0.0
    %709 = vmatpush1.msra.mxu0 0.0
    %710 = vmatprep.subr.mxu0 0.0
    %711 = vmatpush1.msra.mxu0 0.0
    %712 = vmatprep.subr.mxu0 0.0
    %713 = vmatpush1.msra.mxu0 0.0
    %714 = vmatprep.subr.mxu0 0.0
    %715 = vmatpush1.msra.mxu0 0.0
    %716 = vmatprep.mubr.f32.mxu0 0.0
    %717 = vmatmul.mubr.f32.gmra.mrb[0].mxu0 %v650
    %v718 = vpop.f32.mrb[0].mxu0
    %v719 = vadd.f32 0.0, %v718
    %v720 = vpop.f32.mrb[0].mxu0
    %721 = vdwg.mxu0
    %v722 = vmul.f32 %v719, %v719
    %v723 = vsel %vm54, %v722, 0.0
    %724 = vadd.xlane.f32.xlu0 %v723
    %v725 = vpop.xlane.xlu0 %724
    %vm726 = vcmp.gt.f32.partialorder %v725, 1.0
    %v727 = vadd.f32 %v725, 1e-12
    %v728 = vrsqrt.pop %v727
    %v729 = vsel %vm726, %v728, 1.0
    %v730 = vmul.f32 %v719, %v729
    %v732 = vsel %vm54, %v730, 0
    %v735 = vsel %vm54, %v634, 0
    %737 = vmatprep.subr.mxu0 0.0
    %738 = vmatpush1.xpose.msra.mxu0 %v735
    %739 = vmatprep.subr.mxu0 0.0
    %740 = vmatpush1.xpose.msra.mxu0 0.0
    %741 = vmatprep.subr.mxu0 0.0
    %742 = vmatpush1.xpose.msra.mxu0 0.0
    %743 = vmatprep.subr.mxu0 0.0
    %744 = vmatpush1.xpose.msra.mxu0 0.0
    %745 = vmatprep.subr.mxu0 0.0
    %746 = vmatpush1.xpose.msra.mxu0 0.0
    %747 = vmatprep.subr.mxu0 0.0
    %748 = vmatpush1.xpose.msra.mxu0 0.0
    %749 = vmatprep.subr.mxu0 0.0
    %750 = vmatpush1.xpose.msra.mxu0 0.0
    %751 = vmatprep.subr.mxu0 0.0
    %752 = vmatpush1.xpose.msra.mxu0 0.0
    %753 = vmatprep.subr.mxu0 0.0
    %754 = vmatpush1.xpose.msra.mxu0 0.0
    %755 = vmatprep.subr.mxu0 0.0
    %756 = vmatpush1.xpose.msra.mxu0 0.0
    %757 = vmatprep.subr.mxu0 0.0
    %758 = vmatpush1.xpose.msra.mxu0 0.0
    %759 = vmatprep.subr.mxu0 0.0
    %760 = vmatpush1.xpose.msra.mxu0 0.0
    %761 = vmatprep.subr.mxu0 0.0
    %762 = vmatpush1.xpose.msra.mxu0 0.0
    %763 = vmatprep.subr.mxu0 0.0
    %764 = vmatpush1.xpose.msra.mxu0 0.0
    %765 = vmatprep.subr.mxu0 0.0
    %766 = vmatpush1.xpose.msra.mxu0 0.0
    %767 = vmatprep.subr.mxu0 0.0
    %768 = vmatpush1.xpose.msra.mxu0 0.0
    %769 = vmatprep.subr.mxu0 0.0
    %770 = vmatpush1.xpose.msra.mxu0 0.0
    %771 = vmatprep.subr.mxu0 0.0
    %772 = vmatpush1.xpose.msra.mxu0 0.0
    %773 = vmatprep.subr.mxu0 0.0
    %774 = vmatpush1.xpose.msra.mxu0 0.0
    %775 = vmatprep.subr.mxu0 0.0
    %776 = vmatpush1.xpose.msra.mxu0 0.0
    %777 = vmatprep.subr.mxu0 0.0
    %778 = vmatpush1.xpose.msra.mxu0 0.0
    %779 = vmatprep.subr.mxu0 0.0
    %780 = vmatpush1.xpose.msra.mxu0 0.0
    %781 = vmatprep.subr.mxu0 0.0
    %782 = vmatpush1.xpose.msra.mxu0 0.0
    %783 = vmatprep.subr.mxu0 0.0
    %784 = vmatpush1.xpose.msra.mxu0 0.0
    %785 = vmatprep.subr.mxu0 0.0
    %786 = vmatpush1.xpose.msra.mxu0 0.0
    %787 = vmatprep.subr.mxu0 0.0
    %788 = vmatpush1.xpose.msra.mxu0 0.0
    %789 = vmatprep.subr.mxu0 0.0
    %790 = vmatpush1.xpose.msra.mxu0 0.0
    %791 = vmatprep.subr.mxu0 0.0
    %792 = vmatpush1.xpose.msra.mxu0 0.0
    %793 = vmatprep.subr.mxu0 0.0
    %794 = vmatpush1.xpose.msra.mxu0 0.0
    %795 = vmatprep.subr.mxu0 0.0
    %796 = vmatpush1.xpose.msra.mxu0 0.0
    %797 = vmatprep.subr.mxu0 0.0
    %798 = vmatpush1.xpose.msra.mxu0 0.0
    %799 = vmatprep.subr.mxu0 0.0
    %800 = vmatpush1.xpose.msra.mxu0 0.0
    %801 = vmatprep.mubr.f32.mxu0 0.0
    %802 = vmatmul.mubr.f32.gmra.mrb[0].mxu0 %v732
    %v803 = vpop.f32.mrb[0].mxu0
    %v804 = vadd.f32 0.0, %v803
    %v805 = vpop.f32.mrb[0].mxu0
    %806 = vdwg.mxu0
    %vm807 = vcmp.eq.s32.totalorder %v317, %v326
    %v808 = vsel %vm807, %v804, 0.0
    %vm809 = vcmask 64512
    %v810 = vsel %vm809, %v808, 0.0
    %v811 = vrot.slane %v810, 4
    %v812 = vadd.f32 %v810, %v811
    %v813 = vrot.slane %v812, 2
    %v814 = vadd.f32 %v812, %v813
    %v815 = vrot.slane %v814, 1
    %v816 = vadd.f32 %v814, %v815
    %v817 = vand.u32 2147483647, %v816
    %v818 = vsub.f32 0.0, %v817
    %v819 = vmul.f32 %v818, 1.442695
    %v820 = vpow.pop %v819
    %v821 = vadd.f32 %v820, 1.0
    %v822 = vrcp.pop %v821
    %v823 = vmul.f32 1.0, %v822
    %vm824 = vcmp.ge.f32.partialorder %v816, 0.0
    %v825 = vsub.f32 1.0, %v823
    %v826 = vsel %vm824, %v823, %v825
    %vm827 = vcmask 57344
    %828 = vst.msk [vmem:[#allocation3] sm:$0x1] %vm827, %v826
    // Predicated region
    $region42: #{tpu_custom_call.1} parent=1 // pred_check
      _
    $region43: #{tpu_custom_call.1} parent=1 // pred_check_branch
      %830 = sbr.rel (0) target = $region45
    $region44: #{tpu_custom_call.1} parent=1 // pred_region
      %s832 = ssub.s32 16, 16
      %833 = vsyncadd [#allocation4], %s832
      %s835 = sshll.u32 [#allocation3], 4
      %s836 = int_to_ptr.vmem [resolvable:$true] %s835
      %838 = dma.vmem_to_hbm [thread:$0]  %s836, 16, %s10, [#allocation4]
    $region45: #{tpu_custom_call.1} parent=1 // pred_fallthru
      _
    // Predicated region
    $region46: #{tpu_custom_call.1} parent=1 // pred_check
      _
    $region47: #{tpu_custom_call.1} parent=1 // pred_check_branch
      %840 = sbr.rel (0) target = $region49
    $region48: #{tpu_custom_call.1} parent=1 // pred_region
      %841 = dma.done [#allocation4], 16
    $region49: #{tpu_custom_call.1} parent=1 // pred_fallthru
      _
    %842 = vsyncpa [#allocation4], 1

</llo_original>
